<compile_context>
chip_gen: v7x
topology: tpu7x:2x2x1
jax: 0.10.0
libtpu: 0.0.40
codegen_flags: <defaults>
</compile_context>

<pallas_src>
import functools

import jax
import jax.numpy as jnp
from jax.experimental import pallas as pl
from jax.experimental.pallas import tpu as pltpu

HIDDEN_DIM = 64
OUTPUT_DIM = 24
D1, D2 = 512, 256
OUT_PAD = 128              # lane-dense padded output width (>= OUTPUT_DIM)
BN_EPS = 1e-5

# Packed param-vector layout: every segment starts on a 128-lane tile boundary
# so all in-kernel slices are lane-aligned.  b1/b2 are intentionally absent
# (cancelled by the following train-mode BatchNorm, see header comment).
OFF_G1 = 0                     # (64 used / 128 reserved)
OFF_BE1 = 128                  # (64 used / 128 reserved)
OFF_G2 = 256                   # (512)
OFF_BE2 = OFF_G2 + D1          # 768   (512)
OFF_G3 = OFF_BE2 + D1          # 1280  (256)
OFF_BE3 = OFF_G3 + D2          # 1536  (256)
OFF_B3 = OFF_BE3 + D2          # 1792  (24 used / 128 reserved, zero padded)
PACK_LEN = OFF_B3 + OUT_PAD    # 1920 = 15 * 128


def _bn_train_fused(x, gamma, beta):
    """BatchNorm1d training-mode (biased batch stats): single-pass moments
    (E[x^2]-E[x]^2) + fused scale/shift so normalization is one FMA pass."""
    mean = jnp.mean(x, axis=0, keepdims=True)
    mean_sq = jnp.mean(x * x, axis=0, keepdims=True)
    var = mean_sq - mean * mean
    inv = jax.lax.rsqrt(var + BN_EPS)           # EUP
    scale = gamma * inv
    shift = beta - mean * scale
    return x * scale + shift


@functools.partial(jax.jit, static_argnames=("idx",))
def e_f_forward(x, vec, w1, w2, w3p, idx=-1):
    """x: (B, T, HIDDEN_DIM) f32.  Returns (B, OUTPUT_DIM) f32.

    TODO(synk): BatchNorm running_mean/running_var in-place updates (a
    train-mode side effect of the PyTorch module) are not materialized; the
    forward output itself matches PyTorch train() semantics.
    """
    B, T, _ = x.shape
    idx_pos = idx % T          # idx is static -> Python int

    def ef_kernel(x_ref, vec_ref, w1_ref, w2_ref, w3_ref, o_ref):
        xs = x_ref[:, idx_pos, :]                                   # (B, 64) static gather

        g1 = vec_ref[:, OFF_G1:OFF_G1 + HIDDEN_DIM]
        be1 = vec_ref[:, OFF_BE1:OFF_BE1 + HIDDEN_DIM]
        g2 = vec_ref[:, OFF_G2:OFF_G2 + D1]
        be2 = vec_ref[:, OFF_BE2:OFF_BE2 + D1]
        g3 = vec_ref[:, OFF_G3:OFF_G3 + D2]
        be3 = vec_ref[:, OFF_BE3:OFF_BE3 + D2]
        b3 = vec_ref[:, OFF_B3:OFF_B3 + OUT_PAD]                    # zero past col 24

        h1 = _bn_train_fused(xs, g1, be1)                           # (B, 64)
        # b1 omitted: cancelled by the following train-mode BatchNorm.
        z1 = jnp.dot(h1, w1_ref[...],
                     preferred_element_type=jnp.float32)            # (B, 512)

        h2 = _bn_train_fused(z1, g2, be2)
        # b2 omitted for the same reason.
        z2 = jnp.dot(h2, w2_ref[...],
                     preferred_element_type=jnp.float32)            # (B, 256)

        h3 = _bn_train_fused(z2, g3, be3)
        z3 = jnp.dot(h3, w3_ref[...],
                     preferred_element_type=jnp.float32) + b3       # (B, 128) lane-dense

        o_ref[...] = z3.astype(o_ref.dtype)

    flops = 2 * B * (HIDDEN_DIM * D1 + D1 * D2 + D2 * OUT_PAD)
    bytes_accessed = 4 * (x.size + vec.size + w1.size + w2.size + w3p.size + B * OUT_PAD)

    out_pad = pl.pallas_call(
        ef_kernel,
        out_shape=jax.ShapeDtypeStruct((B, OUT_PAD), jnp.float32),
        in_specs=[pl.BlockSpec(memory_space=pltpu.MemorySpace.VMEM)] * 5,
        out_specs=pl.BlockSpec(memory_space=pltpu.MemorySpace.VMEM),
        cost_estimate=pl.CostEstimate(
            flops=flops,
            transcendentals=HIDDEN_DIM + D1 + D2,   # 3x rsqrt over feature vectors
            bytes_accessed=bytes_accessed),
    )(x, vec, w1, w2, w3p)

    return out_pad[:, :OUTPUT_DIM]


def init_params(key):
    """Mirror PyTorch defaults: Linear U(-1/sqrt(fan_in), +1/sqrt(fan_in)) for
    weight & bias; BatchNorm gamma=1, beta=0.  Returns (packed, raw)."""
    ks = jax.random.split(key, 6)

    def linear(kw, kb, fan_in, fan_out):
        bound = 1.0 / (fan_in ** 0.5)
        # weight stored transposed to (fan_in, fan_out) for in-kernel matmul
        w = jax.random.uniform(kw, (fan_in, fan_out), jnp.float32, -bound, bound)
        b = jax.random.uniform(kb, (fan_out,), jnp.float32, -bound, bound)
        return w, b

    w1, b1 = linear(ks[0], ks[1], HIDDEN_DIM, D1)
    w2, b2 = linear(ks[2], ks[3], D1, D2)
    w3, b3 = linear(ks[4], ks[5], D2, OUTPUT_DIM)

    g1 = jnp.ones((HIDDEN_DIM,), jnp.float32)
    be1 = jnp.zeros((HIDDEN_DIM,), jnp.float32)
    g2 = jnp.ones((D1,), jnp.float32)
    be2 = jnp.zeros((D1,), jnp.float32)
    g3 = jnp.ones((D2,), jnp.float32)
    be3 = jnp.zeros((D2,), jnp.float32)

    vec = jnp.zeros((1, PACK_LEN), jnp.float32)
    for off, v in ((OFF_G1, g1), (OFF_BE1, be1),
                   (OFF_G2, g2), (OFF_BE2, be2),
                   (OFF_G3, g3), (OFF_BE3, be3),
                   (OFF_B3, b3)):
        vec = vec.at[0, off:off + v.shape[0]].set(v)

    w3p = jnp.zeros((D2, OUT_PAD), jnp.float32).at[:, :OUTPUT_DIM].set(w3)

    packed = dict(vec=vec, w1=w1, w2=w2, w3p=w3p)
    raw = dict(g1=g1, be1=be1, w1=w1, b1=b1,
               g2=g2, be2=be2, w2=w2, b2=b2,
               g3=g3, be3=be3, w3=w3, b3=b3)
    return packed, raw


def _bn_ref(x, gamma, beta):
    # Exact PyTorch train-mode semantics (two-pass biased variance).
    mean = jnp.mean(x, axis=0, keepdims=True)
    var = jnp.mean((x - mean) * (x - mean), axis=0, keepdims=True)
    return (x - mean) * jax.lax.rsqrt(var + BN_EPS) * gamma + beta


def _reference(x, raw, idx=-1):
    # Full PyTorch forward, including b1/b2 (validates the bias-fold identity).
    xs = x[:, idx, :]
    h = _bn_ref(xs, raw["g1"], raw["be1"]) @ raw["w1"] + raw["b1"]
    h = _bn_ref(h, raw["g2"], raw["be2"]) @ raw["w2"] + raw["b2"]
    h = _bn_ref(h, raw["g3"], raw["be3"]) @ raw["w3"] + raw["b3"]
    return h


if __name__ == "__main__":
    key = jax.random.PRNGKey(0)
    k_x, k_p = jax.random.split(key)

    B, T = 8, 4
    x = jax.random.normal(k_x, (B, T, HIDDEN_DIM), jnp.float32)
    packed, raw = init_params(k_p)

    out = e_f_forward(x, packed["vec"], packed["w1"], packed["w2"], packed["w3p"], idx=-1)
    out = jax.block_until_ready(out)

    ref = _reference(x, raw, idx=-1)
    assert out.shape == (B, OUTPUT_DIM), out.shape
    max_err = float(jnp.max(jnp.abs(out - ref)))
    assert jnp.allclose(out, ref, atol=1e-4, rtol=1e-4), max_err

    print("KERNEL_OK")
</pallas_src>

<mosaic_0001>
module attributes {stable_mosaic.version = 11 : i64} {
  func.func @ef_kernel(%arg0: memref<8x4x64xf32, #tpu.memory_space<vmem>>, %arg1: memref<1x1920xf32, #tpu.memory_space<vmem>>, %arg2: memref<64x512xf32, #tpu.memory_space<vmem>>, %arg3: memref<512x256xf32, #tpu.memory_space<vmem>>, %arg4: memref<256x128xf32, #tpu.memory_space<vmem>>, %arg5: memref<8x128xf32, #tpu.memory_space<vmem>>) attributes {dimension_semantics = [], scalar_prefetch = 0 : i64, scratch_operands = 0 : i64, tpu.core_type = #tpu.core_type<tc>} {
    %c0 = arith.constant 0 : index
    %c3 = arith.constant 3 : index
    %c0_0 = arith.constant 0 : index
    %0 = vector.load %arg0[%c0, %c3, %c0_0] : memref<8x4x64xf32, #tpu.memory_space<vmem>>, vector<8x1x64xf32>
    %1 = vector.shape_cast %0 : vector<8x1x64xf32> to vector<8x64xf32>
    %c0_1 = arith.constant 0 : index
    %c0_2 = arith.constant 0 : index
    %2 = vector.load %arg1[%c0_1, %c0_2] : memref<1x1920xf32, #tpu.memory_space<vmem>>, vector<1x64xf32>
    %c0_3 = arith.constant 0 : index
    %c128 = arith.constant 128 : index
    %3 = vector.load %arg1[%c0_3, %c128] : memref<1x1920xf32, #tpu.memory_space<vmem>>, vector<1x64xf32>
    %c0_4 = arith.constant 0 : index
    %c256 = arith.constant 256 : index
    %4 = vector.load %arg1[%c0_4, %c256] : memref<1x1920xf32, #tpu.memory_space<vmem>>, vector<1x512xf32>
    %c0_5 = arith.constant 0 : index
    %c768 = arith.constant 768 : index
    %5 = vector.load %arg1[%c0_5, %c768] : memref<1x1920xf32, #tpu.memory_space<vmem>>, vector<1x512xf32>
    %c0_6 = arith.constant 0 : index
    %c1280 = arith.constant 1280 : index
    %6 = vector.load %arg1[%c0_6, %c1280] : memref<1x1920xf32, #tpu.memory_space<vmem>>, vector<1x256xf32>
    %c0_7 = arith.constant 0 : index
    %c1536 = arith.constant 1536 : index
    %7 = vector.load %arg1[%c0_7, %c1536] : memref<1x1920xf32, #tpu.memory_space<vmem>>, vector<1x256xf32>
    %c0_8 = arith.constant 0 : index
    %c1792 = arith.constant 1792 : index
    %8 = vector.load %arg1[%c0_8, %c1792] : memref<1x1920xf32, #tpu.memory_space<vmem>>, vector<1x128xf32>
    %cst = arith.constant dense<0.000000e+00> : vector<64xf32>
    %9 = vector.multi_reduction <add>, %1, %cst [0] : vector<8x64xf32> to vector<64xf32>
    %10 = vector.shape_cast %9 : vector<64xf32> to vector<1x64xf32>
    %cst_9 = arith.constant 8.000000e+00 : f32
    %11 = vector.broadcast %cst_9 : f32 to vector<1x64xf32>
    %12 = arith.divf %10, %11 : vector<1x64xf32>
    %13 = arith.mulf %1, %1 : vector<8x64xf32>
    %cst_10 = arith.constant dense<0.000000e+00> : vector<64xf32>
    %14 = vector.multi_reduction <add>, %13, %cst_10 [0] : vector<8x64xf32> to vector<64xf32>
    %15 = vector.shape_cast %14 : vector<64xf32> to vector<1x64xf32>
    %cst_11 = arith.constant 8.000000e+00 : f32
    %16 = vector.broadcast %cst_11 : f32 to vector<1x64xf32>
    %17 = arith.divf %15, %16 : vector<1x64xf32>
    %18 = arith.mulf %12, %12 : vector<1x64xf32>
    %19 = arith.subf %17, %18 : vector<1x64xf32>
    %cst_12 = arith.constant 9.99999974E-6 : f32
    %20 = vector.broadcast %cst_12 : f32 to vector<1x64xf32>
    %21 = arith.addf %19, %20 : vector<1x64xf32>
    %22 = math.rsqrt %21 : vector<1x64xf32>
    %23 = arith.mulf %2, %22 : vector<1x64xf32>
    %24 = arith.mulf %12, %23 : vector<1x64xf32>
    %25 = arith.subf %3, %24 : vector<1x64xf32>
    %26 = vector.broadcast %23 : vector<1x64xf32> to vector<8x64xf32>
    %27 = arith.mulf %1, %26 : vector<8x64xf32>
    %28 = vector.broadcast %25 : vector<1x64xf32> to vector<8x64xf32>
    %29 = arith.addf %27, %28 : vector<8x64xf32>
    %c0_13 = arith.constant 0 : index
    %c0_14 = arith.constant 0 : index
    %30 = vector.load %arg2[%c0_13, %c0_14] : memref<64x512xf32, #tpu.memory_space<vmem>>, vector<64x512xf32>
    %cst_15 = arith.constant dense<0.000000e+00> : vector<8x512xf32>
    %31 = tpu.matmul %29, %30, %cst_15 {dimension_numbers = #tpu.dot_dimension_numbers<[1], [0], [0], [1], [0, 0, 1, 1], [], []>} : vector<8x64xf32>, vector<64x512xf32>, vector<8x512xf32> -> vector<8x512xf32>
    %cst_16 = arith.constant dense<0.000000e+00> : vector<512xf32>
    %32 = vector.multi_reduction <add>, %31, %cst_16 [0] : vector<8x512xf32> to vector<512xf32>
    %33 = vector.shape_cast %32 : vector<512xf32> to vector<1x512xf32>
    %cst_17 = arith.constant 8.000000e+00 : f32
    %34 = vector.broadcast %cst_17 : f32 to vector<1x512xf32>
    %35 = arith.divf %33, %34 : vector<1x512xf32>
    %36 = arith.mulf %31, %31 : vector<8x512xf32>
    %cst_18 = arith.constant dense<0.000000e+00> : vector<512xf32>
    %37 = vector.multi_reduction <add>, %36, %cst_18 [0] : vector<8x512xf32> to vector<512xf32>
    %38 = vector.shape_cast %37 : vector<512xf32> to vector<1x512xf32>
    %cst_19 = arith.constant 8.000000e+00 : f32
    %39 = vector.broadcast %cst_19 : f32 to vector<1x512xf32>
    %40 = arith.divf %38, %39 : vector<1x512xf32>
    %41 = arith.mulf %35, %35 : vector<1x512xf32>
    %42 = arith.subf %40, %41 : vector<1x512xf32>
    %cst_20 = arith.constant 9.99999974E-6 : f32
    %43 = vector.broadcast %cst_20 : f32 to vector<1x512xf32>
    %44 = arith.addf %42, %43 : vector<1x512xf32>
    %45 = math.rsqrt %44 : vector<1x512xf32>
    %46 = arith.mulf %4, %45 : vector<1x512xf32>
    %47 = arith.mulf %35, %46 : vector<1x512xf32>
    %48 = arith.subf %5, %47 : vector<1x512xf32>
    %49 = vector.broadcast %46 : vector<1x512xf32> to vector<8x512xf32>
    %50 = arith.mulf %31, %49 : vector<8x512xf32>
    %51 = vector.broadcast %48 : vector<1x512xf32> to vector<8x512xf32>
    %52 = arith.addf %50, %51 : vector<8x512xf32>
    %c0_21 = arith.constant 0 : index
    %c0_22 = arith.constant 0 : index
    %53 = vector.load %arg3[%c0_21, %c0_22] : memref<512x256xf32, #tpu.memory_space<vmem>>, vector<512x256xf32>
    %cst_23 = arith.constant dense<0.000000e+00> : vector<8x256xf32>
    %54 = tpu.matmul %52, %53, %cst_23 {dimension_numbers = #tpu.dot_dimension_numbers<[1], [0], [0], [1], [0, 0, 1, 1], [], []>} : vector<8x512xf32>, vector<512x256xf32>, vector<8x256xf32> -> vector<8x256xf32>
    %cst_24 = arith.constant dense<0.000000e+00> : vector<256xf32>
    %55 = vector.multi_reduction <add>, %54, %cst_24 [0] : vector<8x256xf32> to vector<256xf32>
    %56 = vector.shape_cast %55 : vector<256xf32> to vector<1x256xf32>
    %cst_25 = arith.constant 8.000000e+00 : f32
    %57 = vector.broadcast %cst_25 : f32 to vector<1x256xf32>
    %58 = arith.divf %56, %57 : vector<1x256xf32>
    %59 = arith.mulf %54, %54 : vector<8x256xf32>
    %cst_26 = arith.constant dense<0.000000e+00> : vector<256xf32>
    %60 = vector.multi_reduction <add>, %59, %cst_26 [0] : vector<8x256xf32> to vector<256xf32>
    %61 = vector.shape_cast %60 : vector<256xf32> to vector<1x256xf32>
    %cst_27 = arith.constant 8.000000e+00 : f32
    %62 = vector.broadcast %cst_27 : f32 to vector<1x256xf32>
    %63 = arith.divf %61, %62 : vector<1x256xf32>
    %64 = arith.mulf %58, %58 : vector<1x256xf32>
    %65 = arith.subf %63, %64 : vector<1x256xf32>
    %cst_28 = arith.constant 9.99999974E-6 : f32
    %66 = vector.broadcast %cst_28 : f32 to vector<1x256xf32>
    %67 = arith.addf %65, %66 : vector<1x256xf32>
    %68 = math.rsqrt %67 : vector<1x256xf32>
    %69 = arith.mulf %6, %68 : vector<1x256xf32>
    %70 = arith.mulf %58, %69 : vector<1x256xf32>
    %71 = arith.subf %7, %70 : vector<1x256xf32>
    %72 = vector.broadcast %69 : vector<1x256xf32> to vector<8x256xf32>
    %73 = arith.mulf %54, %72 : vector<8x256xf32>
    %74 = vector.broadcast %71 : vector<1x256xf32> to vector<8x256xf32>
    %75 = arith.addf %73, %74 : vector<8x256xf32>
    %c0_29 = arith.constant 0 : index
    %c0_30 = arith.constant 0 : index
    %76 = vector.load %arg4[%c0_29, %c0_30] : memref<256x128xf32, #tpu.memory_space<vmem>>, vector<256x128xf32>
    %cst_31 = arith.constant dense<0.000000e+00> : vector<8x128xf32>
    %77 = tpu.matmul %75, %76, %cst_31 {dimension_numbers = #tpu.dot_dimension_numbers<[1], [0], [0], [1], [0, 0, 1, 1], [], []>} : vector<8x256xf32>, vector<256x128xf32>, vector<8x128xf32> -> vector<8x128xf32>
    %78 = vector.broadcast %8 : vector<1x128xf32> to vector<8x128xf32>
    %79 = arith.addf %77, %78 : vector<8x128xf32>
    %c0_32 = arith.constant 0 : index
    %c0_33 = arith.constant 0 : index
    %80 = vector.load %arg5[%c0_32, %c0_33] : memref<8x128xf32, #tpu.memory_space<vmem>>, vector<8x128xf32>
    tpu.vector_store %arg5[%c0_32, %c0_33], %79 {strides = array<i32>} : memref<8x128xf32, #tpu.memory_space<vmem>>, vector<8x128xf32>,
    return
  }
}

</mosaic_0001>

<llo_original>
// kernel: e_f_forward.1
$region0: #{e_f_forward.1}
  #allocation0 [shape = 'u32[]', space=smem, size = 0x4, offset = 0x4, fixed_abs, tag = 'smem constant byte address 0x4 - core index']
  #allocation1 [shape = 'u32[144,128]{1,0:T(1,128)}', space=vmem, size = 0x12000, scoped, tag = 'internal scratch']
  %s0 = inlined_call_operand.hbm [shape: f32[8,4,64], index: 0, kind: input, shape index: {}]
  %s1 = inlined_call_operand.hbm [shape: f32[1,1920], index: 1, kind: input, shape index: {}]
  %s2 = inlined_call_operand.hbm [shape: f32[64,512], index: 2, kind: input, shape index: {}]
  %s3 = inlined_call_operand.hbm [shape: f32[512,256], index: 3, kind: input, shape index: {}]
  %s4 = inlined_call_operand.hbm [shape: f32[256,128], index: 4, kind: input, shape index: {}]
  %s5 = inlined_call_operand.hbm [shape: f32[8,128], index: 5, kind: output, shape index: {}]
  %s6 = sld [smem:[#allocation0]]
  $region50: #{e_f_forward.1} parent=0
    _
  %s8 = ssub.s32 1, %s6
  %s9 = scalar_select 0, %s8, %s6
  $region1: #{e_f_forward.1} parent=0
    #allocation2 [shape = 'u8[16384]{0}', space=vmem, size = 0x4000, scoped, tag = 'input window, operand 0, single buffered']
    #allocation3 [shape = 's32[1]{0}', space=sflag, size = 0x4, scoped, tag = 'scoped memory for e_f_forward.1']
    #allocation4 [shape = 's32[1]{0}', space=sflag, size = 0x4, scoped, tag = 'scoped memory for e_f_forward.1']
    #allocation5 [shape = 'u8[7680]{0}', space=vmem, size = 0x2000, scoped, tag = 'input window, operand 1, single buffered']
    #allocation6 [shape = 's32[1]{0}', space=sflag, size = 0x4, scoped, tag = 'scoped memory for e_f_forward.1']
    #allocation7 [shape = 'u8[131072]{0}', space=vmem, size = 0x20000, scoped, tag = 'input window, operand 2, single buffered']
    #allocation8 [shape = 'u8[524288]{0}', space=vmem, size = 0x80000, scoped, tag = 'input window, operand 3, single buffered']
    #allocation9 [shape = 's32[1]{0}', space=sflag, size = 0x4, scoped, tag = 'scoped memory for e_f_forward.1']
    #allocation10 [shape = 'u8[131072]{0}', space=vmem, size = 0x20000, scoped, tag = 'input window, operand 4, single buffered']
    #allocation11 [shape = 'u8[4096]{0}', space=vmem, size = 0x1000, scoped, tag = 'output window, operand 0, single buffered']
    %10 = vsyncpa [#allocation3], 0
    %11 = vsyncpa [#allocation6], 0
    %12 = vsyncpa [#allocation9], 0
    %13 = vsyncpa [#allocation4], 0
    // Predicated region
    $region2: #{e_f_forward.1} parent=1 // pred_check
      _
    $region3: #{e_f_forward.1} parent=1 // pred_check_branch
      %15 = sbr.rel (0) target = $region5
    $region4: #{e_f_forward.1} parent=1 // pred_region
      %s17 = ssub.s32 512, 512
      %18 = vsyncadd [#allocation3], %s17
      %s19 = sshll.u32 [#allocation2], 4
      %s20 = int_to_ptr.vmem [resolvable:$true] %s19
      %25 = dma.hbm_to_vmem [thread:$0]  %s0, 512, %s20, [#allocation3], 64, 64, 4
    $region5: #{e_f_forward.1} parent=1 // pred_fallthru
      _
    // Predicated region
    $region6: #{e_f_forward.1} parent=1 // pred_check
      _
    $region7: #{e_f_forward.1} parent=1 // pred_check_branch
      %27 = sbr.rel (0) target = $region9
    $region8: #{e_f_forward.1} parent=1 // pred_region
      %s29 = ssub.s32 240, 240
      %30 = vsyncadd [#allocation6], %s29
      %s32 = sshll.u32 [#allocation5], 4
      %s33 = int_to_ptr.vmem [resolvable:$true] %s32
      %35 = dma.hbm_to_vmem [thread:$0]  %s1, 240, %s33, [#allocation6]
    $region9: #{e_f_forward.1} parent=1 // pred_fallthru
      _
    // Predicated region
    $region10: #{e_f_forward.1} parent=1 // pred_check
      _
    $region11: #{e_f_forward.1} parent=1 // pred_check_branch
      %37 = sbr.rel (0) target = $region13
    $region12: #{e_f_forward.1} parent=1 // pred_region
      %s39 = ssub.s32 4096, 4096
      %40 = vsyncadd [#allocation6], %s39
      %s41 = sshll.u32 [#allocation7], 4
      %s42 = int_to_ptr.vmem [resolvable:$true] %s41
      %47 = dma.hbm_to_vmem [thread:$0]  %s2, 4096, %s42, [#allocation6], 512, 512, 32
    $region13: #{e_f_forward.1} parent=1 // pred_fallthru
      _
    // Predicated region
    $region14: #{e_f_forward.1} parent=1 // pred_check
      _
    $region15: #{e_f_forward.1} parent=1 // pred_check_branch
      %49 = sbr.rel (0) target = $region17
    $region16: #{e_f_forward.1} parent=1 // pred_region
      %s51 = ssub.s32 16384, 16384
      %52 = vsyncadd [#allocation9], %s51
      %s53 = sshll.u32 [#allocation8], 4
      %s54 = int_to_ptr.vmem [resolvable:$true] %s53
      %59 = dma.hbm_to_vmem [thread:$0]  %s3, 16384, %s54, [#allocation9], 256, 256, 16
    $region17: #{e_f_forward.1} parent=1 // pred_fallthru
      _
    // Predicated region
    $region18: #{e_f_forward.1} parent=1 // pred_check
      _
    $region19: #{e_f_forward.1} parent=1 // pred_check_branch
      %61 = sbr.rel (0) target = $region21
    $region20: #{e_f_forward.1} parent=1 // pred_region
      %s63 = ssub.s32 4096, 4096
      %64 = vsyncadd [#allocation9], %s63
      %s65 = sshll.u32 [#allocation10], 4
      %s66 = int_to_ptr.vmem [resolvable:$true] %s65
      %71 = dma.hbm_to_vmem [thread:$0]  %s4, 4096, %s66, [#allocation9], 128, 128, 8
    $region21: #{e_f_forward.1} parent=1 // pred_fallthru
      _
    // Predicated region
    $region22: #{e_f_forward.1} parent=1 // pred_check
      _
    $region23: #{e_f_forward.1} parent=1 // pred_check_branch
      %73 = sbr.rel (0) target = $region25
    $region24: #{e_f_forward.1} parent=1 // pred_region
      %74 = dma.done [#allocation3], 512
    $region25: #{e_f_forward.1} parent=1 // pred_fallthru
      _
    // Predicated region
    $region26: #{e_f_forward.1} parent=1 // pred_check
      _
    $region27: #{e_f_forward.1} parent=1 // pred_check_branch
      %76 = sbr.rel (0) target = $region29
    $region28: #{e_f_forward.1} parent=1 // pred_region
      %77 = dma.done [#allocation6], 240
    $region29: #{e_f_forward.1} parent=1 // pred_fallthru
      _
    // Predicated region
    $region30: #{e_f_forward.1} parent=1 // pred_check
      _
    $region31: #{e_f_forward.1} parent=1 // pred_check_branch
      %79 = sbr.rel (0) target = $region33
    $region32: #{e_f_forward.1} parent=1 // pred_region
      %80 = dma.done [#allocation6], 4096
    $region33: #{e_f_forward.1} parent=1 // pred_fallthru
      _
    // Predicated region
    $region34: #{e_f_forward.1} parent=1 // pred_check
      _
    $region35: #{e_f_forward.1} parent=1 // pred_check_branch
      %82 = sbr.rel (0) target = $region37
    $region36: #{e_f_forward.1} parent=1 // pred_region
      %83 = dma.done [#allocation9], 16384
    $region37: #{e_f_forward.1} parent=1 // pred_fallthru
      _
    // Predicated region
    $region38: #{e_f_forward.1} parent=1 // pred_check
      _
    $region39: #{e_f_forward.1} parent=1 // pred_check_branch
      %85 = sbr.rel (0) target = $region41
    $region40: #{e_f_forward.1} parent=1 // pred_region
      %86 = dma.done [#allocation9], 4096
    $region41: #{e_f_forward.1} parent=1 // pred_fallthru
      _
    %v87 = vld [vmem:[#allocation2 + $0x3] sm:$0x1]
    %v88 = vld [vmem:[#allocation2 + $0x7] sm:$0x1]
    %v89 = vld [vmem:[#allocation2 + $0xb] sm:$0x1]
    %v90 = vld [vmem:[#allocation2 + $0xf] sm:$0x1]
    %v91 = vld [vmem:[#allocation2 + $0x13] sm:$0x1]
    %v92 = vld [vmem:[#allocation2 + $0x17] sm:$0x1]
    %v93 = vld [vmem:[#allocation2 + $0x1b] sm:$0x1]
    %v94 = vld [vmem:[#allocation2 + $0x1f] sm:$0x1]
    %v95 = vld [vmem:[#allocation5] sm:$0x1]
    %v96 = vld [vmem:[#allocation5 + $0x1] sm:$0x1]
    %v97 = vld [vmem:[#allocation5 + $0x2] sm:$0xf]
    %v98 = vld [vmem:[#allocation5 + $0x6] sm:$0xf]
    %v99 = vld [vmem:[#allocation5 + $0xa] sm:$0x3]
    %v100 = vld [vmem:[#allocation5 + $0xc] sm:$0x3]
    %v101 = vld [vmem:[#allocation5 + $0xe] sm:$0x1]
    %v110 = vrot.slane %v88, 7
    %vm111 = vcmask 1041409
    %v112 = vsel %vm111, %v110, %v87
    %v113 = vrot.slane %v89, 6
    %vm114 = vcmask 1042434
    %v115 = vsel %vm114, %v113, %v112
    %v116 = vrot.slane %v90, 5
    %vm117 = vcmask 1043459
    %v118 = vsel %vm117, %v116, %v115
    %v119 = vrot.slane %v91, 4
    %vm120 = vcmask 1044484
    %v121 = vsel %vm120, %v119, %v118
    %v122 = vrot.slane %v92, 3
    %vm123 = vcmask 1045509
    %v124 = vsel %vm123, %v122, %v121
    %v125 = vrot.slane %v93, 2
    %vm126 = vcmask 1046534
    %v127 = vsel %vm126, %v125, %v124
    %v128 = vrot.slane %v94, 1
    %vm129 = vcmask 1047559
    %v130 = vsel %vm129, %v128, %v127
    %vm132 = vcmask 523264
    %v133 = vsel %vm132, %v130, 0.0
    %v134 = vrot.slane %v133, 4
    %v135 = vadd.f32 %v133, %v134
    %v136 = vrot.slane %v135, 2
    %v137 = vadd.f32 %v135, %v136
    %v138 = vrot.slane %v137, 1
    %v139 = vadd.f32 %v137, %v138
    %v140 = vrcp.pop 8.0
    %v141 = vmul.f32 %v139, %v140
    %v142 = vmul.f32 %v87, %v87
    %v143 = vmul.f32 %v88, %v88
    %v144 = vmul.f32 %v89, %v89
    %v145 = vmul.f32 %v90, %v90
    %v146 = vmul.f32 %v91, %v91
    %v147 = vmul.f32 %v92, %v92
    %v148 = vmul.f32 %v93, %v93
    %v149 = vmul.f32 %v94, %v94
    %v158 = vrot.slane %v143, 7
    %v159 = vsel %vm111, %v158, %v142
    %v160 = vrot.slane %v144, 6
    %v161 = vsel %vm114, %v160, %v159
    %v162 = vrot.slane %v145, 5
    %v163 = vsel %vm117, %v162, %v161
    %v164 = vrot.slane %v146, 4
    %v165 = vsel %vm120, %v164, %v163
    %v166 = vrot.slane %v147, 3
    %v167 = vsel %vm123, %v166, %v165
    %v168 = vrot.slane %v148, 2
    %v169 = vsel %vm126, %v168, %v167
    %v170 = vrot.slane %v149, 1
    %v171 = vsel %vm129, %v170, %v169
    %v173 = vsel %vm132, %v171, 0.0
    %v174 = vrot.slane %v173, 4
    %v175 = vadd.f32 %v173, %v174
    %v176 = vrot.slane %v175, 2
    %v177 = vadd.f32 %v175, %v176
    %v178 = vrot.slane %v177, 1
    %v179 = vadd.f32 %v177, %v178
    %v180 = vmul.f32 %v179, %v140
    %v181 = vmul.f32 %v141, %v141
    %v182 = vsub.f32 %v180, %v181
    %v183 = vadd.f32 %v182, 1e-05
    %v184 = vrsqrt.pop %v183
    %v185 = vmul.f32 %v95, %v184
    %v186 = vmul.f32 %v141, %v185
    %v187 = vsub.f32 %v96, %v186
    %v189 = vlaneseq
    %v190 = vshrl.u32 %v189, 7
    %v191 = vsub.s32 0, %v190
    %v192 = vrot.slane %v185, %v191
    %v194 = vmul.f32 %v87, %v192
    %v195 = vmul.f32 %v88, %v192
    %v196 = vmul.f32 %v89, %v192
    %v197 = vmul.f32 %v90, %v192
    %v198 = vmul.f32 %v91, %v192
    %v199 = vmul.f32 %v92, %v192
    %v200 = vmul.f32 %v93, %v192
    %v201 = vmul.f32 %v94, %v192
    %v203 = vlaneseq
    %v204 = vshrl.u32 %v203, 7
    %v205 = vsub.s32 0, %v204
    %v206 = vrot.slane %v187, %v205
    %v208 = vadd.f32 %v194, %v206
    %v209 = vadd.f32 %v195, %v206
    %v210 = vadd.f32 %v196, %v206
    %v211 = vadd.f32 %v197, %v206
    %v212 = vadd.f32 %v198, %v206
    %v213 = vadd.f32 %v199, %v206
    %v214 = vadd.f32 %v200, %v206
    %v215 = vadd.f32 %v201, %v206
    %v216 = vld [vmem:[#allocation7] sm:$0xff]
    %v217 = vld [vmem:[#allocation7 + $0x8] sm:$0xff]
    %v218 = vld [vmem:[#allocation7 + $0x10] sm:$0xff]
    %v219 = vld [vmem:[#allocation7 + $0x18] sm:$0xff]
    %v220 = vld [vmem:[#allocation7 + $0x20] sm:$0xff]
    %v221 = vld [vmem:[#allocation7 + $0x28] sm:$0xff]
    %v222 = vld [vmem:[#allocation7 + $0x30] sm:$0xff]
    %v223 = vld [vmem:[#allocation7 + $0x38] sm:$0xff]
    %v224 = vld [vmem:[#allocation7 + $0x40] sm:$0xff]
    %v225 = vld [vmem:[#allocation7 + $0x48] sm:$0xff]
    %v226 = vld [vmem:[#allocation7 + $0x50] sm:$0xff]
    %v227 = vld [vmem:[#allocation7 + $0x58] sm:$0xff]
    %v228 = vld [vmem:[#allocation7 + $0x60] sm:$0xff]
    %v229 = vld [vmem:[#allocation7 + $0x68] sm:$0xff]
    %v230 = vld [vmem:[#allocation7 + $0x70] sm:$0xff]
    %v231 = vld [vmem:[#allocation7 + $0x78] sm:$0xff]
    %v232 = vld [vmem:[#allocation7 + $0x80] sm:$0xff]
    %v233 = vld [vmem:[#allocation7 + $0x88] sm:$0xff]
    %v234 = vld [vmem:[#allocation7 + $0x90] sm:$0xff]
    %v235 = vld [vmem:[#allocation7 + $0x98] sm:$0xff]
    %v236 = vld [vmem:[#allocation7 + $0xa0] sm:$0xff]
    %v237 = vld [vmem:[#allocation7 + $0xa8] sm:$0xff]
    %v238 = vld [vmem:[#allocation7 + $0xb0] sm:$0xff]
    %v239 = vld [vmem:[#allocation7 + $0xb8] sm:$0xff]
    %v240 = vld [vmem:[#allocation7 + $0xc0] sm:$0xff]
    %v241 = vld [vmem:[#allocation7 + $0xc8] sm:$0xff]
    %v242 = vld [vmem:[#allocation7 + $0xd0] sm:$0xff]
    %v243 = vld [vmem:[#allocation7 + $0xd8] sm:$0xff]
    %v244 = vld [vmem:[#allocation7 + $0xe0] sm:$0xff]
    %v245 = vld [vmem:[#allocation7 + $0xe8] sm:$0xff]
    %v246 = vld [vmem:[#allocation7 + $0xf0] sm:$0xff]
    %v247 = vld [vmem:[#allocation7 + $0xf8] sm:$0xff]
    %v256 = vrot.slane %v209, 7
    %v257 = vsel %vm111, %v256, %v208
    %v258 = vrot.slane %v210, 6
    %v259 = vsel %vm114, %v258, %v257
    %v260 = vrot.slane %v211, 5
    %v261 = vsel %vm117, %v260, %v259
    %v262 = vrot.slane %v212, 4
    %v263 = vsel %vm120, %v262, %v261
    %v264 = vrot.slane %v213, 3
    %v265 = vsel %vm123, %v264, %v263
    %v266 = vrot.slane %v214, 2
    %v267 = vsel %vm126, %v266, %v265
    %v268 = vrot.slane %v215, 1
    %v269 = vsel %vm129, %v268, %v267
    %v270 = vsel %vm132, %v269, 0
    %272 = vmatprep.subr.mxu0 %v217
    %273 = vmatpush1.msra.mxu0 %v216
    %274 = vmatprep.subr.mxu0 %v221
    %275 = vmatpush1.msra.mxu0 %v220
    %276 = vmatprep.subr.mxu0 %v225
    %277 = vmatpush1.msra.mxu0 %v224
    %278 = vmatprep.subr.mxu0 %v229
    %279 = vmatpush1.msra.mxu0 %v228
    %280 = vmatprep.subr.mxu0 %v233
    %281 = vmatpush1.msra.mxu0 %v232
    %282 = vmatprep.subr.mxu0 %v237
    %283 = vmatpush1.msra.mxu0 %v236
    %284 = vmatprep.subr.mxu0 %v241
    %285 = vmatpush1.msra.mxu0 %v240
    %286 = vmatprep.subr.mxu0 %v245
    %287 = vmatpush1.msra.mxu0 %v244
    %288 = vmatprep.subr.mxu0 0.0
    %289 = vmatpush1.msra.mxu0 0.0
    %290 = vmatprep.subr.mxu0 0.0
    %291 = vmatpush1.msra.mxu0 0.0
    %292 = vmatprep.subr.mxu0 0.0
    %293 = vmatpush1.msra.mxu0 0.0
    %294 = vmatprep.subr.mxu0 0.0
    %295 = vmatpush1.msra.mxu0 0.0
    %296 = vmatprep.subr.mxu0 0.0
    %297 = vmatpush1.msra.mxu0 0.0
    %298 = vmatprep.subr.mxu0 0.0
    %299 = vmatpush1.msra.mxu0 0.0
    %300 = vmatprep.subr.mxu0 0.0
    %301 = vmatpush1.msra.mxu0 0.0
    %302 = vmatprep.subr.mxu0 0.0
    %303 = vmatpush1.msra.mxu0 0.0
    %304 = vmatprep.subr.mxu0 0.0
    %305 = vmatpush1.msra.mxu0 0.0
    %306 = vmatprep.subr.mxu0 0.0
    %307 = vmatpush1.msra.mxu0 0.0
    %308 = vmatprep.subr.mxu0 0.0
    %309 = vmatpush1.msra.mxu0 0.0
    %310 = vmatprep.subr.mxu0 0.0
    %311 = vmatpush1.msra.mxu0 0.0
    %312 = vmatprep.subr.mxu0 0.0
    %313 = vmatpush1.msra.mxu0 0.0
    %314 = vmatprep.subr.mxu0 0.0
    %315 = vmatpush1.msra.mxu0 0.0
    %316 = vmatprep.subr.mxu0 0.0
    %317 = vmatpush1.msra.mxu0 0.0
    %318 = vmatprep.subr.mxu0 0.0
    %319 = vmatpush1.msra.mxu0 0.0
    %320 = vmatprep.subr.mxu0 0.0
    %321 = vmatpush1.msra.mxu0 0.0
    %322 = vmatprep.subr.mxu0 0.0
    %323 = vmatpush1.msra.mxu0 0.0
    %324 = vmatprep.subr.mxu0 0.0
    %325 = vmatpush1.msra.mxu0 0.0
    %326 = vmatprep.subr.mxu0 0.0
    %327 = vmatpush1.msra.mxu0 0.0
    %328 = vmatprep.subr.mxu0 0.0
    %329 = vmatpush1.msra.mxu0 0.0
    %330 = vmatprep.subr.mxu0 0.0
    %331 = vmatpush1.msra.mxu0 0.0
    %332 = vmatprep.subr.mxu0 0.0
    %333 = vmatpush1.msra.mxu0 0.0
    %334 = vmatprep.subr.mxu0 0.0
    %335 = vmatpush1.msra.mxu0 0.0
    %336 = vmatprep.mubr.f32.mxu0 0.0
    %337 = vmatmul.mubr.f32.gmra.mrb[0].mxu0 %v270
    %v338 = vpop.f32.mrb[0].mxu0
    %v339 = vadd.f32 0.0, %v338
    %v340 = vpop.f32.mrb[0].mxu0
    %v341 = vadd.f32 0.0, %v340
    %342 = vdwg.mxu0
    %343 = vmatprep.subr.mxu0 %v219
    %344 = vmatpush1.msra.mxu0 %v218
    %345 = vmatprep.subr.mxu0 %v223
    %346 = vmatpush1.msra.mxu0 %v222
    %347 = vmatprep.subr.mxu0 %v227
    %348 = vmatpush1.msra.mxu0 %v226
    %349 = vmatprep.subr.mxu0 %v231
    %350 = vmatpush1.msra.mxu0 %v230
    %351 = vmatprep.subr.mxu0 %v235
    %352 = vmatpush1.msra.mxu0 %v234
    %353 = vmatprep.subr.mxu0 %v239
    %354 = vmatpush1.msra.mxu0 %v238
    %355 = vmatprep.subr.mxu0 %v243
    %356 = vmatpush1.msra.mxu0 %v242
    %357 = vmatprep.subr.mxu0 %v247
    %358 = vmatpush1.msra.mxu0 %v246
    %359 = vmatprep.subr.mxu0 0.0
    %360 = vmatpush1.msra.mxu0 0.0
    %361 = vmatprep.subr.mxu0 0.0
    %362 = vmatpush1.msra.mxu0 0.0
    %363 = vmatprep.subr.mxu0 0.0
    %364 = vmatpush1.msra.mxu0 0.0
    %365 = vmatprep.subr.mxu0 0.0
    %366 = vmatpush1.msra.mxu0 0.0
    %367 = vmatprep.subr.mxu0 0.0
    %368 = vmatpush1.msra.mxu0 0.0
    %369 = vmatprep.subr.mxu0 0.0
    %370 = vmatpush1.msra.mxu0 0.0
    %371 = vmatprep.subr.mxu0 0.0
    %372 = vmatpush1.msra.mxu0 0.0
    %373 = vmatprep.subr.mxu0 0.0
    %374 = vmatpush1.msra.mxu0 0.0
    %375 = vmatprep.subr.mxu0 0.0
    %376 = vmatpush1.msra.mxu0 0.0
    %377 = vmatprep.subr.mxu0 0.0
    %378 = vmatpush1.msra.mxu0 0.0
    %379 = vmatprep.subr.mxu0 0.0
    %380 = vmatpush1.msra.mxu0 0.0
    %381 = vmatprep.subr.mxu0 0.0
    %382 = vmatpush1.msra.mxu0 0.0
    %383 = vmatprep.subr.mxu0 0.0
    %384 = vmatpush1.msra.mxu0 0.0
    %385 = vmatprep.subr.mxu0 0.0
    %386 = vmatpush1.msra.mxu0 0.0
    %387 = vmatprep.subr.mxu0 0.0
    %388 = vmatpush1.msra.mxu0 0.0
    %389 = vmatprep.subr.mxu0 0.0
    %390 = vmatpush1.msra.mxu0 0.0
    %391 = vmatprep.subr.mxu0 0.0
    %392 = vmatpush1.msra.mxu0 0.0
    %393 = vmatprep.subr.mxu0 0.0
    %394 = vmatpush1.msra.mxu0 0.0
    %395 = vmatprep.subr.mxu0 0.0
    %396 = vmatpush1.msra.mxu0 0.0
    %397 = vmatprep.subr.mxu0 0.0
    %398 = vmatpush1.msra.mxu0 0.0
    %399 = vmatprep.subr.mxu0 0.0
    %400 = vmatpush1.msra.mxu0 0.0
    %401 = vmatprep.subr.mxu0 0.0
    %402 = vmatpush1.msra.mxu0 0.0
    %403 = vmatprep.subr.mxu0 0.0
    %404 = vmatpush1.msra.mxu0 0.0
    %405 = vmatprep.subr.mxu0 0.0
    %406 = vmatpush1.msra.mxu0 0.0
    %407 = vmatprep.mubr.f32.mxu0 0.0
    %408 = vmatmul.mubr.f32.gmra.mrb[0].mxu0 %v270
    %v409 = vpop.f32.mrb[0].mxu0
    %v410 = vadd.f32 0.0, %v409
    %v411 = vpop.f32.mrb[0].mxu0
    %v412 = vadd.f32 0.0, %v411
    %413 = vdwg.mxu0
    %v414 = vrot.slane %v339, 4
    %v415 = vadd.f32 %v339, %v414
    %v416 = vrot.slane %v415, 2
    %v417 = vadd.f32 %v415, %v416
    %v418 = vrot.slane %v417, 1
    %v419 = vadd.f32 %v417, %v418
    %v420 = vrot.slane %v341, 4
    %v421 = vadd.f32 %v341, %v420
    %v422 = vrot.slane %v421, 2
    %v423 = vadd.f32 %v421, %v422
    %v424 = vrot.slane %v423, 1
    %v425 = vadd.f32 %v423, %v424
    %v426 = vrot.slane %v410, 4
    %v427 = vadd.f32 %v410, %v426
    %v428 = vrot.slane %v427, 2
    %v429 = vadd.f32 %v427, %v428
    %v430 = vrot.slane %v429, 1
    %v431 = vadd.f32 %v429, %v430
    %v432 = vrot.slane %v412, 4
    %v433 = vadd.f32 %v412, %v432
    %v434 = vrot.slane %v433, 2
    %v435 = vadd.f32 %v433, %v434
    %v436 = vrot.slane %v435, 1
    %v437 = vadd.f32 %v435, %v436
    %v438 = vmul.f32 %v419, %v140
    %v439 = vmul.f32 %v425, %v140
    %v440 = vmul.f32 %v431, %v140
    %v441 = vmul.f32 %v437, %v140
    %v442 = vmul.f32 %v339, %v339
    %v443 = vmul.f32 %v341, %v341
    %v444 = vmul.f32 %v410, %v410
    %v445 = vmul.f32 %v412, %v412
    %v446 = vrot.slane %v442, 4
    %v447 = vadd.f32 %v442, %v446
    %v448 = vrot.slane %v447, 2
    %v449 = vadd.f32 %v447, %v448
    %v450 = vrot.slane %v449, 1
    %v451 = vadd.f32 %v449, %v450
    %v452 = vrot.slane %v443, 4
    %v453 = vadd.f32 %v443, %v452
    %v454 = vrot.slane %v453, 2
    %v455 = vadd.f32 %v453, %v454
    %v456 = vrot.slane %v455, 1
    %v457 = vadd.f32 %v455, %v456
    %v458 = vrot.slane %v444, 4
    %v459 = vadd.f32 %v444, %v458
    %v460 = vrot.slane %v459, 2
    %v461 = vadd.f32 %v459, %v460
    %v462 = vrot.slane %v461, 1
    %v463 = vadd.f32 %v461, %v462
    %v464 = vrot.slane %v445, 4
    %v465 = vadd.f32 %v445, %v464
    %v466 = vrot.slane %v465, 2
    %v467 = vadd.f32 %v465, %v466
    %v468 = vrot.slane %v467, 1
    %v469 = vadd.f32 %v467, %v468
    %v470 = vmul.f32 %v451, %v140
    %v471 = vmul.f32 %v457, %v140
    %v472 = vmul.f32 %v463, %v140
    %v473 = vmul.f32 %v469, %v140
    %v474 = vmul.f32 %v438, %v438
    %v475 = vmul.f32 %v439, %v439
    %v476 = vmul.f32 %v440, %v440
    %v477 = vmul.f32 %v441, %v441
    %v478 = vsub.f32 %v470, %v474
    %v479 = vsub.f32 %v471, %v475
    %v480 = vsub.f32 %v472, %v476
    %v481 = vsub.f32 %v473, %v477
    %v482 = vadd.f32 %v478, 1e-05
    %v483 = vadd.f32 %v479, 1e-05
    %v484 = vadd.f32 %v480, 1e-05
    %v485 = vadd.f32 %v481, 1e-05
    %v486 = vrsqrt.pop %v482
    %v487 = vrsqrt.pop %v483
    %v488 = vrsqrt.pop %v484
    %v489 = vrsqrt.pop %v485
    %v494 = vcombine.low %v486, %v487
    %v495 = vcombine.low %v488, %v489
    %v497 = vunpack.c.l.s4 1966171168
    %v498 = vunpack.c.0.s8 %v497
    %v499 = vlaneseq
    %v500 = vshrl.u32 %v499, 7
    %v501 = vsub.s32 %v498, %v500
    %v502 = vrot.slane %v494, %v501
    %v504 = vunpack.c.l.s4 1966171168
    %v505 = vunpack.c.0.s8 %v504
    %v506 = vlaneseq
    %v507 = vshrl.u32 %v506, 7
    %v508 = vsub.s32 %v505, %v507
    %v509 = vrot.slane %v495, %v508
    %v510 = vcombine.low %v502, %v509
    %v512 = vunpack.c.l.s4 1966171168
    %v513 = vunpack.c.0.s8 %v512
    %v514 = vlaneseq
    %v515 = vshrl.u32 %v514, 7
    %v516 = vsub.s32 %v513, %v515
    %v517 = vrot.slane %v510, %v516
    %v519 = vmul.f32 %v97, %v517
    %v521 = vlaneseq
    %v522 = vshrl.u32 %v521, 7
    %v523 = vsub.s32 0, %v522
    %v524 = vrot.slane %v519, %v523
    %v525 = vlaneseq
    %v526 = vshrl.u32 %v525, 7
    %v527 = vsub.s32 1, %v526
    %v528 = vrot.slane %v519, %v527
    %v529 = vlaneseq
    %v530 = vshrl.u32 %v529, 7
    %v531 = vsub.s32 2, %v530
    %v532 = vrot.slane %v519, %v531
    %v533 = vlaneseq
    %v534 = vshrl.u32 %v533, 7
    %v535 = vsub.s32 3, %v534
    %v536 = vrot.slane %v519, %v535
    %v541 = vmul.f32 %v438, %v524
    %v542 = vmul.f32 %v439, %v528
    %v543 = vmul.f32 %v440, %v532
    %v544 = vmul.f32 %v441, %v536
    %v549 = vcombine.low %v541, %v542
    %v550 = vcombine.low %v543, %v544
    %v552 = vunpack.c.l.s4 1966171168
    %v553 = vunpack.c.0.s8 %v552
    %v554 = vlaneseq
    %v555 = vshrl.u32 %v554, 7
    %v556 = vsub.s32 %v553, %v555
    %v557 = vrot.slane %v549, %v556
    %v559 = vunpack.c.l.s4 1966171168
    %v560 = vunpack.c.0.s8 %v559
    %v561 = vlaneseq
    %v562 = vshrl.u32 %v561, 7
    %v563 = vsub.s32 %v560, %v562
    %v564 = vrot.slane %v550, %v563
    %v565 = vcombine.low %v557, %v564
    %v567 = vunpack.c.l.s4 1966171168
    %v568 = vunpack.c.0.s8 %v567
    %v569 = vlaneseq
    %v570 = vshrl.u32 %v569, 7
    %v571 = vsub.s32 %v568, %v570
    %v572 = vrot.slane %v565, %v571
    %v574 = vsub.f32 %v98, %v572
    %v575 = vmul.f32 %v339, %v524
    %v576 = vmul.f32 %v341, %v528
    %v577 = vmul.f32 %v410, %v532
    %v578 = vmul.f32 %v412, %v536
    %v580 = vlaneseq
    %v581 = vshrl.u32 %v580, 7
    %v582 = vsub.s32 0, %v581
    %v583 = vrot.slane %v574, %v582
    %v584 = vlaneseq
    %v585 = vshrl.u32 %v584, 7
    %v586 = vsub.s32 1, %v585
    %v587 = vrot.slane %v574, %v586
    %v588 = vlaneseq
    %v589 = vshrl.u32 %v588, 7
    %v590 = vsub.s32 2, %v589
    %v591 = vrot.slane %v574, %v590
    %v592 = vlaneseq
    %v593 = vshrl.u32 %v592, 7
    %v594 = vsub.s32 3, %v593
    %v595 = vrot.slane %v574, %v594
    %v600 = vadd.f32 %v575, %v583
    %v601 = vadd.f32 %v576, %v587
    %v602 = vadd.f32 %v577, %v591
    %v603 = vadd.f32 %v578, %v595
    %v604 = vld [vmem:[#allocation8] sm:$0xff]
    %v605 = vld [vmem:[#allocation8 + $0x8] sm:$0xff]
    %v606 = vld [vmem:[#allocation8 + $0x10] sm:$0xff]
    %v607 = vld [vmem:[#allocation8 + $0x18] sm:$0xff]
    %v608 = vld [vmem:[#allocation8 + $0x20] sm:$0xff]
    %v609 = vld [vmem:[#allocation8 + $0x28] sm:$0xff]
    %v610 = vld [vmem:[#allocation8 + $0x30] sm:$0xff]
    %v611 = vld [vmem:[#allocation8 + $0x38] sm:$0xff]
    %v612 = vld [vmem:[#allocation8 + $0x40] sm:$0xff]
    %v613 = vld [vmem:[#allocation8 + $0x48] sm:$0xff]
    %v614 = vld [vmem:[#allocation8 + $0x50] sm:$0xff]
    %v615 = vld [vmem:[#allocation8 + $0x58] sm:$0xff]
    %v616 = vld [vmem:[#allocation8 + $0x60] sm:$0xff]
    %v617 = vld [vmem:[#allocation8 + $0x68] sm:$0xff]
    %v618 = vld [vmem:[#allocation8 + $0x70] sm:$0xff]
    %v619 = vld [vmem:[#allocation8 + $0x78] sm:$0xff]
    %v620 = vld [vmem:[#allocation8 + $0x80] sm:$0xff]
    %v621 = vld [vmem:[#allocation8 + $0x88] sm:$0xff]
    %v622 = vld [vmem:[#allocation8 + $0x90] sm:$0xff]
    %v623 = vld [vmem:[#allocation8 + $0x98] sm:$0xff]
    %v624 = vld [vmem:[#allocation8 + $0xa0] sm:$0xff]
    %v625 = vld [vmem:[#allocation8 + $0xa8] sm:$0xff]
    %v626 = vld [vmem:[#allocation8 + $0xb0] sm:$0xff]
    %v627 = vld [vmem:[#allocation8 + $0xb8] sm:$0xff]
    %v628 = vld [vmem:[#allocation8 + $0xc0] sm:$0xff]
    %v629 = vld [vmem:[#allocation8 + $0xc8] sm:$0xff]
    %v630 = vld [vmem:[#allocation8 + $0xd0] sm:$0xff]
    %v631 = vld [vmem:[#allocation8 + $0xd8] sm:$0xff]
    %v632 = vld [vmem:[#allocation8 + $0xe0] sm:$0xff]
    %v633 = vld [vmem:[#allocation8 + $0xe8] sm:$0xff]
    %v634 = vld [vmem:[#allocation8 + $0xf0] sm:$0xff]
    %v635 = vld [vmem:[#allocation8 + $0xf8] sm:$0xff]
    %v636 = vld [vmem:[#allocation8 + $0x100] sm:$0xff]
    %v637 = vld [vmem:[#allocation8 + $0x108] sm:$0xff]
    %v638 = vld [vmem:[#allocation8 + $0x110] sm:$0xff]
    %v639 = vld [vmem:[#allocation8 + $0x118] sm:$0xff]
    %v640 = vld [vmem:[#allocation8 + $0x120] sm:$0xff]
    %v641 = vld [vmem:[#allocation8 + $0x128] sm:$0xff]
    %v642 = vld [vmem:[#allocation8 + $0x130] sm:$0xff]
    %v643 = vld [vmem:[#allocation8 + $0x138] sm:$0xff]
    %v644 = vld [vmem:[#allocation8 + $0x140] sm:$0xff]
    %v645 = vld [vmem:[#allocation8 + $0x148] sm:$0xff]
    %v646 = vld [vmem:[#allocation8 + $0x150] sm:$0xff]
    %v647 = vld [vmem:[#allocation8 + $0x158] sm:$0xff]
    %v648 = vld [vmem:[#allocation8 + $0x160] sm:$0xff]
    %v649 = vld [vmem:[#allocation8 + $0x168] sm:$0xff]
    %v650 = vld [vmem:[#allocation8 + $0x170] sm:$0xff]
    %v651 = vld [vmem:[#allocation8 + $0x178] sm:$0xff]
    %v652 = vld [vmem:[#allocation8 + $0x180] sm:$0xff]
    %v653 = vld [vmem:[#allocation8 + $0x188] sm:$0xff]
    %v654 = vld [vmem:[#allocation8 + $0x190] sm:$0xff]
    %v655 = vld [vmem:[#allocation8 + $0x198] sm:$0xff]
    %v656 = vld [vmem:[#allocation8 + $0x1a0] sm:$0xff]
    %v657 = vld [vmem:[#allocation8 + $0x1a8] sm:$0xff]
    %v658 = vld [vmem:[#allocation8 + $0x1b0] sm:$0xff]
    %v659 = vld [vmem:[#allocation8 + $0x1b8] sm:$0xff]
    %v660 = vld [vmem:[#allocation8 + $0x1c0] sm:$0xff]
    %v661 = vld [vmem:[#allocation8 + $0x1c8] sm:$0xff]
    %v662 = vld [vmem:[#allocation8 + $0x1d0] sm:$0xff]
    %v663 = vld [vmem:[#allocation8 + $0x1d8] sm:$0xff]
    %v664 = vld [vmem:[#allocation8 + $0x1e0] sm:$0xff]
    %v665 = vld [vmem:[#allocation8 + $0x1e8] sm:$0xff]
    %v666 = vld [vmem:[#allocation8 + $0x1f0] sm:$0xff]
    %v667 = vld [vmem:[#allocation8 + $0x1f8] sm:$0xff]
    %v668 = vld [vmem:[#allocation8 + $0x200] sm:$0xff]
    %v669 = vld [vmem:[#allocation8 + $0x208] sm:$0xff]
    %v670 = vld [vmem:[#allocation8 + $0x210] sm:$0xff]
    %v671 = vld [vmem:[#allocation8 + $0x218] sm:$0xff]
    %v672 = vld [vmem:[#allocation8 + $0x220] sm:$0xff]
    %v673 = vld [vmem:[#allocation8 + $0x228] sm:$0xff]
    %v674 = vld [vmem:[#allocation8 + $0x230] sm:$0xff]
    %v675 = vld [vmem:[#allocation8 + $0x238] sm:$0xff]
    %v676 = vld [vmem:[#allocation8 + $0x240] sm:$0xff]
    %v677 = vld [vmem:[#allocation8 + $0x248] sm:$0xff]
    %v678 = vld [vmem:[#allocation8 + $0x250] sm:$0xff]
    %v679 = vld [vmem:[#allocation8 + $0x258] sm:$0xff]
    %v680 = vld [vmem:[#allocation8 + $0x260] sm:$0xff]
    %v681 = vld [vmem:[#allocation8 + $0x268] sm:$0xff]
    %v682 = vld [vmem:[#allocation8 + $0x270] sm:$0xff]
    %v683 = vld [vmem:[#allocation8 + $0x278] sm:$0xff]
    %v684 = vld [vmem:[#allocation8 + $0x280] sm:$0xff]
    %v685 = vld [vmem:[#allocation8 + $0x288] sm:$0xff]
    %v686 = vld [vmem:[#allocation8 + $0x290] sm:$0xff]
    %v687 = vld [vmem:[#allocation8 + $0x298] sm:$0xff]
    %v688 = vld [vmem:[#allocation8 + $0x2a0] sm:$0xff]
    %v689 = vld [vmem:[#allocation8 + $0x2a8] sm:$0xff]
    %v690 = vld [vmem:[#allocation8 + $0x2b0] sm:$0xff]
    %v691 = vld [vmem:[#allocation8 + $0x2b8] sm:$0xff]
    %v692 = vld [vmem:[#allocation8 + $0x2c0] sm:$0xff]
    %v693 = vld [vmem:[#allocation8 + $0x2c8] sm:$0xff]
    %v694 = vld [vmem:[#allocation8 + $0x2d0] sm:$0xff]
    %v695 = vld [vmem:[#allocation8 + $0x2d8] sm:$0xff]
    %v696 = vld [vmem:[#allocation8 + $0x2e0] sm:$0xff]
    %v697 = vld [vmem:[#allocation8 + $0x2e8] sm:$0xff]
    %v698 = vld [vmem:[#allocation8 + $0x2f0] sm:$0xff]
    %v699 = vld [vmem:[#allocation8 + $0x2f8] sm:$0xff]
    %v700 = vld [vmem:[#allocation8 + $0x300] sm:$0xff]
    %v701 = vld [vmem:[#allocation8 + $0x308] sm:$0xff]
    %v702 = vld [vmem:[#allocation8 + $0x310] sm:$0xff]
    %v703 = vld [vmem:[#allocation8 + $0x318] sm:$0xff]
    %v704 = vld [vmem:[#allocation8 + $0x320] sm:$0xff]
    %v705 = vld [vmem:[#allocation8 + $0x328] sm:$0xff]
    %v706 = vld [vmem:[#allocation8 + $0x330] sm:$0xff]
    %v707 = vld [vmem:[#allocation8 + $0x338] sm:$0xff]
    %v708 = vld [vmem:[#allocation8 + $0x340] sm:$0xff]
    %v709 = vld [vmem:[#allocation8 + $0x348] sm:$0xff]
    %v710 = vld [vmem:[#allocation8 + $0x350] sm:$0xff]
    %v711 = vld [vmem:[#allocation8 + $0x358] sm:$0xff]
    %v712 = vld [vmem:[#allocation8 + $0x360] sm:$0xff]
    %v713 = vld [vmem:[#allocation8 + $0x368] sm:$0xff]
    %v714 = vld [vmem:[#allocation8 + $0x370] sm:$0xff]
    %v715 = vld [vmem:[#allocation8 + $0x378] sm:$0xff]
    %v716 = vld [vmem:[#allocation8 + $0x380] sm:$0xff]
    %v717 = vld [vmem:[#allocation8 + $0x388] sm:$0xff]
    %v718 = vld [vmem:[#allocation8 + $0x390] sm:$0xff]
    %v719 = vld [vmem:[#allocation8 + $0x398] sm:$0xff]
    %v720 = vld [vmem:[#allocation8 + $0x3a0] sm:$0xff]
    %v721 = vld [vmem:[#allocation8 + $0x3a8] sm:$0xff]
    %v722 = vld [vmem:[#allocation8 + $0x3b0] sm:$0xff]
    %v723 = vld [vmem:[#allocation8 + $0x3b8] sm:$0xff]
    %v724 = vld [vmem:[#allocation8 + $0x3c0] sm:$0xff]
    %v725 = vld [vmem:[#allocation8 + $0x3c8] sm:$0xff]
    %v726 = vld [vmem:[#allocation8 + $0x3d0] sm:$0xff]
    %v727 = vld [vmem:[#allocation8 + $0x3d8] sm:$0xff]
    %v728 = vld [vmem:[#allocation8 + $0x3e0] sm:$0xff]
    %v729 = vld [vmem:[#allocation8 + $0x3e8] sm:$0xff]
    %v730 = vld [vmem:[#allocation8 + $0x3f0] sm:$0xff]
    %v731 = vld [vmem:[#allocation8 + $0x3f8] sm:$0xff]
    %732 = vmatprep.subr.mxu0 %v605
    %733 = vmatpush1.msra.mxu0 %v604
    %734 = vmatprep.subr.mxu0 %v607
    %735 = vmatpush1.msra.mxu0 %v606
    %736 = vmatprep.subr.mxu0 %v609
    %737 = vmatpush1.msra.mxu0 %v608
    %738 = vmatprep.subr.mxu0 %v611
    %739 = vmatpush1.msra.mxu0 %v610
    %740 = vmatprep.subr.mxu0 %v613
    %741 = vmatpush1.msra.mxu0 %v612
    %742 = vmatprep.subr.mxu0 %v615
    %743 = vmatpush1.msra.mxu0 %v614
    %744 = vmatprep.subr.mxu0 %v617
    %745 = vmatpush1.msra.mxu0 %v616
    %746 = vmatprep.subr.mxu0 %v619
    %747 = vmatpush1.msra.mxu0 %v618
    %748 = vmatprep.subr.mxu0 %v621
    %749 = vmatpush1.msra.mxu0 %v620
    %750 = vmatprep.subr.mxu0 %v623
    %751 = vmatpush1.msra.mxu0 %v622
    %752 = vmatprep.subr.mxu0 %v625
    %753 = vmatpush1.msra.mxu0 %v624
    %754 = vmatprep.subr.mxu0 %v627
    %755 = vmatpush1.msra.mxu0 %v626
    %756 = vmatprep.subr.mxu0 %v629
    %757 = vmatpush1.msra.mxu0 %v628
    %758 = vmatprep.subr.mxu0 %v631
    %759 = vmatpush1.msra.mxu0 %v630
    %760 = vmatprep.subr.mxu0 %v633
    %761 = vmatpush1.msra.mxu0 %v632
    %762 = vmatprep.subr.mxu0 %v635
    %763 = vmatpush1.msra.mxu0 %v634
    %764 = vmatprep.subr.mxu0 %v637
    %765 = vmatpush1.msra.mxu0 %v636
    %766 = vmatprep.subr.mxu0 %v639
    %767 = vmatpush1.msra.mxu0 %v638
    %768 = vmatprep.subr.mxu0 %v641
    %769 = vmatpush1.msra.mxu0 %v640
    %770 = vmatprep.subr.mxu0 %v643
    %771 = vmatpush1.msra.mxu0 %v642
    %772 = vmatprep.subr.mxu0 %v645
    %773 = vmatpush1.msra.mxu0 %v644
    %774 = vmatprep.subr.mxu0 %v647
    %775 = vmatpush1.msra.mxu0 %v646
    %776 = vmatprep.subr.mxu0 %v649
    %777 = vmatpush1.msra.mxu0 %v648
    %778 = vmatprep.subr.mxu0 %v651
    %779 = vmatpush1.msra.mxu0 %v650
    %780 = vmatprep.subr.mxu0 %v653
    %781 = vmatpush1.msra.mxu0 %v652
    %782 = vmatprep.subr.mxu0 %v655
    %783 = vmatpush1.msra.mxu0 %v654
    %784 = vmatprep.subr.mxu0 %v657
    %785 = vmatpush1.msra.mxu0 %v656
    %786 = vmatprep.subr.mxu0 %v659
    %787 = vmatpush1.msra.mxu0 %v658
    %788 = vmatprep.subr.mxu0 %v661
    %789 = vmatpush1.msra.mxu0 %v660
    %790 = vmatprep.subr.mxu0 %v663
    %791 = vmatpush1.msra.mxu0 %v662
    %792 = vmatprep.subr.mxu0 %v665
    %793 = vmatpush1.msra.mxu0 %v664
    %794 = vmatprep.subr.mxu0 %v667
    %795 = vmatpush1.msra.mxu0 %v666
    %796 = vmatprep.mubr.f32.mxu0 %v601
    %797 = vmatmul.mubr.f32.gmra.mrb[0].mxu0 %v600
    %v798 = vpop.f32.mrb[0].mxu0
    %v799 = vadd.f32 0.0, %v798
    %v800 = vpop.f32.mrb[0].mxu0
    %v801 = vadd.f32 0.0, %v800
    %802 = vdwg.mxu0
    %803 = vmatprep.subr.mxu0 %v669
    %804 = vmatpush1.msra.mxu0 %v668
    %805 = vmatprep.subr.mxu0 %v671
    %806 = vmatpush1.msra.mxu0 %v670
    %807 = vmatprep.subr.mxu0 %v673
    %808 = vmatpush1.msra.mxu0 %v672
    %809 = vmatprep.subr.mxu0 %v675
    %810 = vmatpush1.msra.mxu0 %v674
    %811 = vmatprep.subr.mxu0 %v677
    %812 = vmatpush1.msra.mxu0 %v676
    %813 = vmatprep.subr.mxu0 %v679
    %814 = vmatpush1.msra.mxu0 %v678
    %815 = vmatprep.subr.mxu0 %v681
    %816 = vmatpush1.msra.mxu0 %v680
    %817 = vmatprep.subr.mxu0 %v683
    %818 = vmatpush1.msra.mxu0 %v682
    %819 = vmatprep.subr.mxu0 %v685
    %820 = vmatpush1.msra.mxu0 %v684
    %821 = vmatprep.subr.mxu0 %v687
    %822 = vmatpush1.msra.mxu0 %v686
    %823 = vmatprep.subr.mxu0 %v689
    %824 = vmatpush1.msra.mxu0 %v688
    %825 = vmatprep.subr.mxu0 %v691
    %826 = vmatpush1.msra.mxu0 %v690
    %827 = vmatprep.subr.mxu0 %v693
    %828 = vmatpush1.msra.mxu0 %v692
    %829 = vmatprep.subr.mxu0 %v695
    %830 = vmatpush1.msra.mxu0 %v694
    %831 = vmatprep.subr.mxu0 %v697
    %832 = vmatpush1.msra.mxu0 %v696
    %833 = vmatprep.subr.mxu0 %v699
    %834 = vmatpush1.msra.mxu0 %v698
    %835 = vmatprep.subr.mxu0 %v701
    %836 = vmatpush1.msra.mxu0 %v700
    %837 = vmatprep.subr.mxu0 %v703
    %838 = vmatpush1.msra.mxu0 %v702
    %839 = vmatprep.subr.mxu0 %v705
    %840 = vmatpush1.msra.mxu0 %v704
    %841 = vmatprep.subr.mxu0 %v707
    %842 = vmatpush1.msra.mxu0 %v706
    %843 = vmatprep.subr.mxu0 %v709
    %844 = vmatpush1.msra.mxu0 %v708
    %845 = vmatprep.subr.mxu0 %v711
    %846 = vmatpush1.msra.mxu0 %v710
    %847 = vmatprep.subr.mxu0 %v713
    %848 = vmatpush1.msra.mxu0 %v712
    %849 = vmatprep.subr.mxu0 %v715
    %850 = vmatpush1.msra.mxu0 %v714
    %851 = vmatprep.subr.mxu0 %v717
    %852 = vmatpush1.msra.mxu0 %v716
    %853 = vmatprep.subr.mxu0 %v719
    %854 = vmatpush1.msra.mxu0 %v718
    %855 = vmatprep.subr.mxu0 %v721
    %856 = vmatpush1.msra.mxu0 %v720
    %857 = vmatprep.subr.mxu0 %v723
    %858 = vmatpush1.msra.mxu0 %v722
    %859 = vmatprep.subr.mxu0 %v725
    %860 = vmatpush1.msra.mxu0 %v724
    %861 = vmatprep.subr.mxu0 %v727
    %862 = vmatpush1.msra.mxu0 %v726
    %863 = vmatprep.subr.mxu0 %v729
    %864 = vmatpush1.msra.mxu0 %v728
    %865 = vmatprep.subr.mxu0 %v731
    %866 = vmatpush1.msra.mxu0 %v730
    %867 = vmatprep.mubr.f32.mxu0 %v603
    %868 = vmatmul.mubr.f32.gmra.mrb[0].mxu0 %v602
    %v869 = vpop.f32.mrb[0].mxu0
    %v870 = vadd.f32 %v799, %v869
    %v871 = vpop.f32.mrb[0].mxu0
    %v872 = vadd.f32 %v801, %v871
    %873 = vdwg.mxu0
    %v874 = vrot.slane %v870, 4
    %v875 = vadd.f32 %v870, %v874
    %v876 = vrot.slane %v875, 2
    %v877 = vadd.f32 %v875, %v876
    %v878 = vrot.slane %v877, 1
    %v879 = vadd.f32 %v877, %v878
    %v880 = vrot.slane %v872, 4
    %v881 = vadd.f32 %v872, %v880
    %v882 = vrot.slane %v881, 2
    %v883 = vadd.f32 %v881, %v882
    %v884 = vrot.slane %v883, 1
    %v885 = vadd.f32 %v883, %v884
    %v886 = vmul.f32 %v879, %v140
    %v887 = vmul.f32 %v885, %v140
    %v888 = vmul.f32 %v870, %v870
    %v889 = vmul.f32 %v872, %v872
    %v890 = vrot.slane %v888, 4
    %v891 = vadd.f32 %v888, %v890
    %v892 = vrot.slane %v891, 2
    %v893 = vadd.f32 %v891, %v892
    %v894 = vrot.slane %v893, 1
    %v895 = vadd.f32 %v893, %v894
    %v896 = vrot.slane %v889, 4
    %v897 = vadd.f32 %v889, %v896
    %v898 = vrot.slane %v897, 2
    %v899 = vadd.f32 %v897, %v898
    %v900 = vrot.slane %v899, 1
    %v901 = vadd.f32 %v899, %v900
    %v902 = vmul.f32 %v895, %v140
    %v903 = vmul.f32 %v901, %v140
    %v904 = vmul.f32 %v886, %v886
    %v905 = vmul.f32 %v887, %v887
    %v906 = vsub.f32 %v902, %v904
    %v907 = vsub.f32 %v903, %v905
    %v908 = vadd.f32 %v906, 1e-05
    %v909 = vadd.f32 %v907, 1e-05
    %v910 = vrsqrt.pop %v908
    %v911 = vrsqrt.pop %v909
    %v914 = vcombine.low %v910, %v911
    %v916 = vunpack.c.l.s4 1966171168
    %v917 = vunpack.c.0.s8 %v916
    %v918 = vlaneseq
    %v919 = vshrl.u32 %v918, 7
    %v920 = vsub.s32 %v917, %v919
    %v921 = vrot.slane %v914, %v920
    %v923 = vunpack.c.l.s4 1966171168
    %v924 = vunpack.c.0.s8 %v923
    %v925 = vlaneseq
    %v926 = vshrl.u32 %v925, 7
    %v927 = vsub.s32 %v924, %v926
    %v928 = vrot.slane %v921, %v927
    %v930 = vmul.f32 %v99, %v928
    %v932 = vlaneseq
    %v933 = vshrl.u32 %v932, 7
    %v934 = vsub.s32 0, %v933
    %v935 = vrot.slane %v930, %v934
    %v936 = vlaneseq
    %v937 = vshrl.u32 %v936, 7
    %v938 = vsub.s32 1, %v937
    %v939 = vrot.slane %v930, %v938
    %v942 = vmul.f32 %v886, %v935
    %v943 = vmul.f32 %v887, %v939
    %v946 = vcombine.low %v942, %v943
    %v948 = vunpack.c.l.s4 1966171168
    %v949 = vunpack.c.0.s8 %v948
    %v950 = vlaneseq
    %v951 = vshrl.u32 %v950, 7
    %v952 = vsub.s32 %v949, %v951
    %v953 = vrot.slane %v946, %v952
    %v955 = vunpack.c.l.s4 1966171168
    %v956 = vunpack.c.0.s8 %v955
    %v957 = vlaneseq
    %v958 = vshrl.u32 %v957, 7
    %v959 = vsub.s32 %v956, %v958
    %v960 = vrot.slane %v953, %v959
    %v962 = vsub.f32 %v100, %v960
    %v963 = vmul.f32 %v870, %v935
    %v964 = vmul.f32 %v872, %v939
    %v966 = vlaneseq
    %v967 = vshrl.u32 %v966, 7
    %v968 = vsub.s32 0, %v967
    %v969 = vrot.slane %v962, %v968
    %v970 = vlaneseq
    %v971 = vshrl.u32 %v970, 7
    %v972 = vsub.s32 1, %v971
    %v973 = vrot.slane %v962, %v972
    %v976 = vadd.f32 %v963, %v969
    %v977 = vadd.f32 %v964, %v973
    %v978 = vld [vmem:[#allocation10] sm:$0xff]
    %v979 = vld [vmem:[#allocation10 + $0x8] sm:$0xff]
    %v980 = vld [vmem:[#allocation10 + $0x10] sm:$0xff]
    %v981 = vld [vmem:[#allocation10 + $0x18] sm:$0xff]
    %v982 = vld [vmem:[#allocation10 + $0x20] sm:$0xff]
    %v983 = vld [vmem:[#allocation10 + $0x28] sm:$0xff]
    %v984 = vld [vmem:[#allocation10 + $0x30] sm:$0xff]
    %v985 = vld [vmem:[#allocation10 + $0x38] sm:$0xff]
    %v986 = vld [vmem:[#allocation10 + $0x40] sm:$0xff]
    %v987 = vld [vmem:[#allocation10 + $0x48] sm:$0xff]
    %v988 = vld [vmem:[#allocation10 + $0x50] sm:$0xff]
    %v989 = vld [vmem:[#allocation10 + $0x58] sm:$0xff]
    %v990 = vld [vmem:[#allocation10 + $0x60] sm:$0xff]
    %v991 = vld [vmem:[#allocation10 + $0x68] sm:$0xff]
    %v992 = vld [vmem:[#allocation10 + $0x70] sm:$0xff]
    %v993 = vld [vmem:[#allocation10 + $0x78] sm:$0xff]
    %v994 = vld [vmem:[#allocation10 + $0x80] sm:$0xff]
    %v995 = vld [vmem:[#allocation10 + $0x88] sm:$0xff]
    %v996 = vld [vmem:[#allocation10 + $0x90] sm:$0xff]
    %v997 = vld [vmem:[#allocation10 + $0x98] sm:$0xff]
    %v998 = vld [vmem:[#allocation10 + $0xa0] sm:$0xff]
    %v999 = vld [vmem:[#allocation10 + $0xa8] sm:$0xff]
    %v1000 = vld [vmem:[#allocation10 + $0xb0] sm:$0xff]
    %v1001 = vld [vmem:[#allocation10 + $0xb8] sm:$0xff]
    %v1002 = vld [vmem:[#allocation10 + $0xc0] sm:$0xff]
    %v1003 = vld [vmem:[#allocation10 + $0xc8] sm:$0xff]
    %v1004 = vld [vmem:[#allocation10 + $0xd0] sm:$0xff]
    %v1005 = vld [vmem:[#allocation10 + $0xd8] sm:$0xff]
    %v1006 = vld [vmem:[#allocation10 + $0xe0] sm:$0xff]
    %v1007 = vld [vmem:[#allocation10 + $0xe8] sm:$0xff]
    %v1008 = vld [vmem:[#allocation10 + $0xf0] sm:$0xff]
    %v1009 = vld [vmem:[#allocation10 + $0xf8] sm:$0xff]
    %v1011 = vlaneseq
    %v1012 = vshrl.u32 %v1011, 7
    %v1013 = vsub.s32 0, %v1012
    %v1014 = vrot.slane %v101, %v1013
    %1016 = vmatprep.subr.mxu0 0.0
    %1017 = vmatpush1.msra.mxu0 %v978
    %1018 = vmatprep.subr.mxu0 0.0
    %1019 = vmatpush1.msra.mxu0 %v979
    %1020 = vmatprep.subr.mxu0 0.0
    %1021 = vmatpush1.msra.mxu0 %v980
    %1022 = vmatprep.subr.mxu0 0.0
    %1023 = vmatpush1.msra.mxu0 %v981
    %1024 = vmatprep.subr.mxu0 0.0
    %1025 = vmatpush1.msra.mxu0 %v982
    %1026 = vmatprep.subr.mxu0 0.0
    %1027 = vmatpush1.msra.mxu0 %v983
    %1028 = vmatprep.subr.mxu0 0.0
    %1029 = vmatpush1.msra.mxu0 %v984
    %1030 = vmatprep.subr.mxu0 0.0
    %1031 = vmatpush1.msra.mxu0 %v985
    %1032 = vmatprep.subr.mxu0 0.0
    %1033 = vmatpush1.msra.mxu0 %v986
    %1034 = vmatprep.subr.mxu0 0.0
    %1035 = vmatpush1.msra.mxu0 %v987
    %1036 = vmatprep.subr.mxu0 0.0
    %1037 = vmatpush1.msra.mxu0 %v988
    %1038 = vmatprep.subr.mxu0 0.0
    %1039 = vmatpush1.msra.mxu0 %v989
    %1040 = vmatprep.subr.mxu0 0.0
    %1041 = vmatpush1.msra.mxu0 %v990
    %1042 = vmatprep.subr.mxu0 0.0
    %1043 = vmatpush1.msra.mxu0 %v991
    %1044 = vmatprep.subr.mxu0 0.0
    %1045 = vmatpush1.msra.mxu0 %v992
    %1046 = vmatprep.subr.mxu0 0.0
    %1047 = vmatpush1.msra.mxu0 %v993
    %1048 = vmatprep.subr.mxu0 0.0
    %1049 = vmatpush1.msra.mxu0 %v994
    %1050 = vmatprep.subr.mxu0 0.0
    %1051 = vmatpush1.msra.mxu0 %v995
    %1052 = vmatprep.subr.mxu0 0.0
    %1053 = vmatpush1.msra.mxu0 %v996
    %1054 = vmatprep.subr.mxu0 0.0
    %1055 = vmatpush1.msra.mxu0 %v997
    %1056 = vmatprep.subr.mxu0 0.0
    %1057 = vmatpush1.msra.mxu0 %v998
    %1058 = vmatprep.subr.mxu0 0.0
    %1059 = vmatpush1.msra.mxu0 %v999
    %1060 = vmatprep.subr.mxu0 0.0
    %1061 = vmatpush1.msra.mxu0 %v1000
    %1062 = vmatprep.subr.mxu0 0.0
    %1063 = vmatpush1.msra.mxu0 %v1001
    %1064 = vmatprep.subr.mxu0 0.0
    %1065 = vmatpush1.msra.mxu0 %v1002
    %1066 = vmatprep.subr.mxu0 0.0
    %1067 = vmatpush1.msra.mxu0 %v1003
    %1068 = vmatprep.subr.mxu0 0.0
    %1069 = vmatpush1.msra.mxu0 %v1004
    %1070 = vmatprep.subr.mxu0 0.0
    %1071 = vmatpush1.msra.mxu0 %v1005
    %1072 = vmatprep.subr.mxu0 0.0
    %1073 = vmatpush1.msra.mxu0 %v1006
    %1074 = vmatprep.subr.mxu0 0.0
    %1075 = vmatpush1.msra.mxu0 %v1007
    %1076 = vmatprep.subr.mxu0 0.0
    %1077 = vmatpush1.msra.mxu0 %v1008
    %1078 = vmatprep.subr.mxu0 0.0
    %1079 = vmatpush1.msra.mxu0 %v1009
    %1080 = vmatprep.mubr.f32.mxu0 %v977
    %1081 = vmatmul.mubr.f32.gmra.mrb[0].mxu0 %v976
    %v1082 = vpop.f32.mrb[0].mxu0
    %v1083 = vadd.f32 %v1014, %v1082
    %v1084 = vpop.f32.mrb[0].mxu0
    %1085 = vdwg.mxu0
    %1086 = vst [vmem:[#allocation11] sm:$0xff] %v1083
    // Predicated region
    $region42: #{e_f_forward.1} parent=1 // pred_check
      _
    $region43: #{e_f_forward.1} parent=1 // pred_check_branch
      %1088 = sbr.rel (0) target = $region45
    $region44: #{e_f_forward.1} parent=1 // pred_region
      %s1090 = ssub.s32 128, 128
      %1091 = vsyncadd [#allocation4], %s1090
      %s1093 = sshll.u32 [#allocation11], 4
      %s1094 = int_to_ptr.vmem [resolvable:$true] %s1093
      %1096 = dma.vmem_to_hbm [thread:$0]  %s1094, 128, %s5, [#allocation4]
    $region45: #{e_f_forward.1} parent=1 // pred_fallthru
      _
    // Predicated region
    $region46: #{e_f_forward.1} parent=1 // pred_check
      _
    $region47: #{e_f_forward.1} parent=1 // pred_check_branch
      %1098 = sbr.rel (0) target = $region49
    $region48: #{e_f_forward.1} parent=1 // pred_region
      %1099 = dma.done [#allocation4], 128
    $region49: #{e_f_forward.1} parent=1 // pred_fallthru
      _
    %1100 = vsyncpa [#allocation3], 1
    %1101 = vsyncpa [#allocation6], 1
    %1102 = vsyncpa [#allocation9], 1
    %1103 = vsyncpa [#allocation4], 1

</llo_original>
